<compile_context>
chip_gen: v6e
topology: v6e:2x2x1
jax: 0.10.0
libtpu: 0.0.40
codegen_flags: <defaults>
</compile_context>

<pallas_src>
import jax
import jax.numpy as jnp
from jax.experimental import pallas as pl
from jax.experimental.pallas import tpu as pltpu

_LANE = 128


# ----------------------------------------------------------------------------
# Buffer construction (mirrors RotaryPosEmbed2D.__init__, flattened over H*W)
# ----------------------------------------------------------------------------
def make_rope2d_buffers(shape, dim, dtype=jnp.float32):
    assert dim % 2 == 0, "feature dim must be even (the PyTorch split requires it)"
    H, W = shape
    g0, g1 = jnp.meshgrid(jnp.arange(H), jnp.arange(W), indexing="ij")
    coords = jnp.stack([g0, g1]).reshape(2, -1)                       # (2, H*W)
    half = dim // 2
    d1 = half // 2
    d2 = half - d1
    inv_freq1 = 10000.0 ** (-(jnp.arange(d1, dtype=jnp.float32) / d1))
    inv_freq2 = 10000.0 ** (-(jnp.arange(d2, dtype=jnp.float32) / d2))
    sinusoid1 = coords[0][:, None].astype(jnp.float32) * inv_freq1    # (H*W, d1)
    sinusoid2 = coords[1][:, None].astype(jnp.float32) * inv_freq2    # (H*W, d2)
    sin1 = jnp.sin(sinusoid1).astype(dtype)
    cos1 = jnp.cos(sinusoid1).astype(dtype)
    sin2 = jnp.sin(sinusoid2).astype(dtype)
    cos2 = jnp.cos(sinusoid2).astype(dtype)
    return (cos1, sin1, cos2, sin2), (d1, d2)


def fuse_rope2d_buffers(buffers):
    """Fuse the four (S, d) buffers into two full-D (S, D) buffers such that
         out = x * cos_full + swap_halves(x) * sin_signed
    reproduces the original 4-way split/concat forward exactly."""
    cos1, sin1, cos2, sin2 = buffers
    cos_full = jnp.concatenate([cos1, cos2, cos1, cos2], axis=-1)
    sin_signed = jnp.concatenate([-sin1, -sin2, sin1, sin2], axis=-1)
    return cos_full, sin_signed


# ----------------------------------------------------------------------------
# Kernel
# ----------------------------------------------------------------------------
def _rope2d_kernel_factory(seg, last_dim):
    """seg = original feature dim D; last_dim = folded lane dim (k * D)."""
    half = seg // 2
    folded = seg != last_dim

    def kernel(x_ref, cos_ref, sin_ref, o_ref):
        x = x_ref[...]                                   # (bb, rows, last_dim)
        if folded:
            # Segmented half-swap: within every D-wide segment of the folded
            # lane axis, swap the two D/2 halves.  For lane offset < D/2 the
            # source is +D/2 ahead, otherwise -D/2 behind; neither crosses a
            # segment boundary, so two full-axis rolls + a select suffice.
            # (128 % D == 0 here, so D is a power of two -> mask via AND.)
            lane = jax.lax.broadcasted_iota(jnp.int32, x.shape, x.ndim - 1)
            is_lo = (lane & (seg - 1)) < half
            fwd = jnp.roll(x, -half, axis=-1)            # [j] <- x[j + half]
            bwd = jnp.roll(x, half, axis=-1)             # [j] <- x[j - half]
            x_swap = jnp.where(is_lo, fwd, bwd)
        elif half % _LANE == 0:
            # Lane-aligned half rotation -> single XLU roll (co-issues with VPU).
            x_swap = pltpu.roll(x, shift=half, axis=-1)
        else:
            x_swap = jnp.concatenate([x[..., half:], x[..., :half]], axis=-1)
        o_ref[...] = (x * cos_ref[...] + x_swap * sin_ref[...]).astype(o_ref.dtype)

    return kernel


# ----------------------------------------------------------------------------
# Tiling heuristics
# ----------------------------------------------------------------------------
def _tpu_generation_params():
    """Returns (x_block_budget_bytes, vmem_limit_bytes, prefer_multi_step)."""
    try:
        vmem = int(pltpu.get_tpu_info().vmem_capacity_bytes)
    except Exception:
        vmem = None
    if vmem is not None and vmem <= 64 * 1024 * 1024:
        # v7x-class: 64 MiB VMEM per TC, 2 TCs -> keep >= 2 grid steps.
        return 5 * 1024 * 1024, 48 * 1024 * 1024, True
    if vmem is not None:
        # v5e/v6e-class: 128 MiB physical VMEM, single TensorCore.
        return 7 * 1024 * 1024, 64 * 1024 * 1024, False
    # Unknown backend (e.g. interpret mode): conservative, valid everywhere.
    return 4 * 1024 * 1024, 40 * 1024 * 1024, True


def _fold_factor(S, D):
    """How many spatial rows to fold into the lane axis (free reshape)."""
    if D >= _LANE or _LANE % D != 0:
        return 1
    k = _LANE // D
    while k > 1 and S % k:
        k -= 1
    return k


def _round_down(x, m):
    return max(m, (x // m) * m)


# ----------------------------------------------------------------------------
# Wrapper
# ----------------------------------------------------------------------------
def rotary_pos_embed_2d(x, cos_full, sin_signed, *, donate_input=False):
    """x: (B, H, W, D); cos_full/sin_signed: fused (S, D) buffers, S = H*W.

    Set donate_input=True (and donate x at the jit boundary) to alias the
    output onto x's HBM buffer; leave False if x is still needed afterwards.
    """
    B, H, W, D = x.shape
    S = H * W
    assert cos_full.shape == (S, D) and sin_signed.shape == (S, D)

    budget, vmem_limit, prefer_multi = _tpu_generation_params()

    # Fold spatial rows into the lane axis (contiguous reshape, zero data
    # movement) so the last dim is lane-dense even when D < 128.
    k = _fold_factor(S, D)
    S_f, D_f = S // k, D * k
    x_f = x.reshape(B, S_f, D_f)
    cos_f = cos_full.reshape(S_f, D_f)
    sin_f = sin_signed.reshape(S_f, D_f)

    itemsize = jnp.dtype(x.dtype).itemsize
    row_bytes = D_f * itemsize
    align = 8 * max(1, 4 // itemsize)            # sublane alignment for partial blocks

    rows_cap = max(1, budget // row_bytes)
    if S_f <= rows_cap:
        rows_blk = S_f                            # whole image per block
        bb = max(1, min(B, budget // max(1, S_f * row_bytes)))
    else:
        rows_blk = _round_down(min(S_f, rows_cap), align)
        bb = 1
    n_rows = pl.cdiv(S_f, rows_blk)
    if prefer_multi and B > 1 and n_rows * pl.cdiv(B, bb) < 2:
        bb = (B + 1) // 2                         # give both v7x cores work
    n_batch = pl.cdiv(B, bb)

    # Spatial-tile axis OUTER, batch INNER: the cos/sin block index only changes
    # with the outer axis, so the buffers stay VMEM-resident across batch steps.
    grid = (n_rows, n_batch)
    kernel = _rope2d_kernel_factory(D, D_f)

    out = pl.pallas_call(
        kernel,
        out_shape=jax.ShapeDtypeStruct((B, S_f, D_f), x.dtype),
        grid_spec=pltpu.PrefetchScalarGridSpec(
            num_scalar_prefetch=0,
            grid=grid,
            in_specs=[
                pl.BlockSpec((bb, rows_blk, D_f), lambda i, b: (b, i, 0)),
                pl.BlockSpec((rows_blk, D_f), lambda i, b: (i, 0)),
                pl.BlockSpec((rows_blk, D_f), lambda i, b: (i, 0)),
            ],
            out_specs=pl.BlockSpec((bb, rows_blk, D_f), lambda i, b: (b, i, 0)),
        ),
        compiler_params=pltpu.CompilerParams(
            dimension_semantics=("parallel", "parallel"),
            vmem_limit_bytes=vmem_limit,
        ),
        input_output_aliases=({0: 0} if donate_input else {}),
    )(x_f, cos_f, sin_f)
    return out.reshape(B, H, W, D)


# ----------------------------------------------------------------------------
# Pure-JAX reference matching the PyTorch forward (4-way split/concat)
# ----------------------------------------------------------------------------
def rotary_pos_embed_2d_ref(x, buffers, dims):
    cos1, sin1, cos2, sin2 = buffers
    d1, d2 = dims
    B, H, W, D = x.shape
    c1 = cos1.reshape(H, W, d1)
    s1 = sin1.reshape(H, W, d1)
    c2 = cos2.reshape(H, W, d2)
    s2 = sin2.reshape(H, W, d2)
    x11 = x[..., :d1]
    x21 = x[..., d1:d1 + d2]
    x12 = x[..., d1 + d2:d1 + d2 + d1]
    x22 = x[..., d1 + d2 + d1:]
    return jnp.concatenate(
        [x11 * c1 - x12 * s1,
         x21 * c2 - x22 * s2,
         x12 * c1 + x11 * s1,
         x22 * c2 + x21 * s2],
        axis=-1,
    )


if __name__ == "__main__":
    B = 2
    shape = (16, 16)
    dim = 32

    key = jax.random.PRNGKey(0)
    x = jax.random.normal(key, (B, shape[0], shape[1], dim), dtype=jnp.float32)

    # fp32 coefficients for bit-parity with the fp32 PyTorch module.
    buffers, dims = make_rope2d_buffers(shape, dim, dtype=jnp.float32)
    cos_full, sin_signed = fuse_rope2d_buffers(buffers)

    out = jax.block_until_ready(rotary_pos_embed_2d(x, cos_full, sin_signed))
    ref = rotary_pos_embed_2d_ref(x, buffers, dims)

    assert out.shape == x.shape and out.dtype == x.dtype
    assert jnp.allclose(out, ref, atol=1e-5, rtol=1e-5)

    print("KERNEL_OK")
</pallas_src>

<mosaic_0001>
module attributes {stable_mosaic.version = 11 : i64} {
  func.func @kernel(%arg0: i32, %arg1: i32, %arg2: memref<1x64x128xf32, #tpu.memory_space<vmem>>, %arg3: memref<64x128xf32, #tpu.memory_space<vmem>>, %arg4: memref<64x128xf32, #tpu.memory_space<vmem>>, %arg5: memref<1x64x128xf32, #tpu.memory_space<vmem>>) attributes {dimension_semantics = [#tpu.dimension_semantics<parallel>, #tpu.dimension_semantics<parallel>], iteration_bounds = array<i64: 1, 2>, scalar_prefetch = 0 : i64, scratch_operands = 0 : i64, tpu.core_type = #tpu.core_type<tc>, window_params = [{transform_indices = @transform_0, window_bounds = array<i64: 1, 64, 128>}, {transform_indices = @transform_1, window_bounds = array<i64: 64, 128>}, {transform_indices = @transform_2, window_bounds = array<i64: 64, 128>}, {transform_indices = @transform_3, window_bounds = array<i64: 1, 64, 128>}]} {
    %c0 = arith.constant 0 : index
    %c0_0 = arith.constant 0 : index
    %c0_1 = arith.constant 0 : index
    %0 = vector.load %arg2[%c0, %c0_0, %c0_1] : memref<1x64x128xf32, #tpu.memory_space<vmem>>, vector<1x64x128xf32>
    %1 = tpu.iota {dimensions = array<i32: 2>} : vector<1x64x128xi32>
    %c31_i32 = arith.constant 31 : i32
    %2 = vector.broadcast %c31_i32 : i32 to vector<1x64x128xi32>
    %3 = arith.andi %1, %2 : vector<1x64x128xi32>
    %c16_i32 = arith.constant 16 : i32
    %4 = vector.broadcast %c16_i32 : i32 to vector<1x64x128xi32>
    %5 = arith.cmpi slt, %3, %4 : vector<1x64x128xi32>
    %6 = vector.extract_strided_slice %0 {offsets = [0, 0, 16], sizes = [1, 64, 112], strides = [1, 1, 1]} : vector<1x64x128xf32> to vector<1x64x112xf32>
    %7 = vector.extract_strided_slice %0 {offsets = [0, 0, 0], sizes = [1, 64, 16], strides = [1, 1, 1]} : vector<1x64x128xf32> to vector<1x64x16xf32>
    %8 = tpu.concatenate %6, %7 in 2 : vector<1x64x112xf32>, vector<1x64x16xf32> -> vector<1x64x128xf32>
    %9 = vector.extract_strided_slice %0 {offsets = [0, 0, 112], sizes = [1, 64, 16], strides = [1, 1, 1]} : vector<1x64x128xf32> to vector<1x64x16xf32>
    %10 = vector.extract_strided_slice %0 {offsets = [0, 0, 0], sizes = [1, 64, 112], strides = [1, 1, 1]} : vector<1x64x128xf32> to vector<1x64x112xf32>
    %11 = tpu.concatenate %9, %10 in 2 : vector<1x64x16xf32>, vector<1x64x112xf32> -> vector<1x64x128xf32>
    %12 = arith.select %5, %8, %11 : vector<1x64x128xi1>, vector<1x64x128xf32>
    %c0_2 = arith.constant 0 : index
    %c0_3 = arith.constant 0 : index
    %13 = vector.load %arg3[%c0_2, %c0_3] : memref<64x128xf32, #tpu.memory_space<vmem>>, vector<64x128xf32>
    %14 = vector.shape_cast %13 : vector<64x128xf32> to vector<1x64x128xf32>
    %15 = arith.mulf %0, %14 : vector<1x64x128xf32>
    %c0_4 = arith.constant 0 : index
    %c0_5 = arith.constant 0 : index
    %16 = vector.load %arg4[%c0_4, %c0_5] : memref<64x128xf32, #tpu.memory_space<vmem>>, vector<64x128xf32>
    %17 = vector.shape_cast %16 : vector<64x128xf32> to vector<1x64x128xf32>
    %18 = arith.mulf %12, %17 : vector<1x64x128xf32>
    %19 = arith.addf %15, %18 : vector<1x64x128xf32>
    %c0_6 = arith.constant 0 : index
    %c0_7 = arith.constant 0 : index
    %c0_8 = arith.constant 0 : index
    %20 = vector.load %arg5[%c0_6, %c0_7, %c0_8] : memref<1x64x128xf32, #tpu.memory_space<vmem>>, vector<1x64x128xf32>
    tpu.vector_store %arg5[%c0_6, %c0_7, %c0_8], %19 {strides = array<i32>} : memref<1x64x128xf32, #tpu.memory_space<vmem>>, vector<1x64x128xf32>,
    return
  }
  func.func @transform_0(%arg0: i32, %arg1: i32) -> (i32, i32, i32) {
    %c0_i32 = arith.constant 0 : i32
    %c0_i32_0 = arith.constant 0 : i32
    return %arg1, %arg0, %c0_i32 : i32, i32, i32
  }
  func.func @transform_1(%arg0: i32, %arg1: i32) -> (i32, i32) {
    %c0_i32 = arith.constant 0 : i32
    %c0_i32_0 = arith.constant 0 : i32
    return %arg0, %c0_i32 : i32, i32
  }
  func.func @transform_2(%arg0: i32, %arg1: i32) -> (i32, i32) {
    %c0_i32 = arith.constant 0 : i32
    %c0_i32_0 = arith.constant 0 : i32
    return %arg0, %c0_i32 : i32, i32
  }
  func.func @transform_3(%arg0: i32, %arg1: i32) -> (i32, i32, i32) {
    %c0_i32 = arith.constant 0 : i32
    %c0_i32_0 = arith.constant 0 : i32
    return %arg1, %arg0, %c0_i32 : i32, i32, i32
  }
}

</mosaic_0001>

<llo_original>
// kernel: tpu_custom_call.1
$region0: #{tpu_custom_call.1}
  #allocation0 [shape = 'u32[]', space=smem, size = 0x4, offset = 0x4, fixed_abs, tag = 'smem constant byte address 0x4 - core index']
  #allocation1 [shape = 'u32[144,128]{1,0:T(1,128)}', space=vmem, size = 0x12000, scoped, tag = 'internal scratch']
  %s0 = inlined_call_operand.hbm [shape: f32[2,64,128], index: 0, kind: input, shape index: {}]
  %s1 = inlined_call_operand.hbm [shape: f32[64,128], index: 1, kind: input, shape index: {}]
  %s2 = inlined_call_operand.hbm [shape: f32[64,128], index: 2, kind: input, shape index: {}]
  %s3 = inlined_call_operand.hbm [shape: f32[2,64,128], index: 3, kind: output, shape index: {}]
  %s4 = sld [smem:[#allocation0]]
  $region57: #{tpu_custom_call.1} parent=0
    _
  %s6 = ssub.s32 1, %s4
  %s7 = scalar_select 0, %s6, %s4
  $region1: #{tpu_custom_call.1} parent=0
    #allocation2 [shape = 'u8[65536]{0}', space=vmem, size = 0x10000, scoped, tag = 'input window, operand 0']
    #allocation3 [shape = 's32[2]{0}', space=sflag, size = 0x8, scoped, tag = 'scoped memory for tpu_custom_call.1']
    #allocation4 [shape = 's32[2]{0}', space=sflag, size = 0x8, scoped, tag = 'scoped memory for tpu_custom_call.1']
    #allocation5 [shape = 'u8[32768]{0}', space=vmem, size = 0x8000, scoped, tag = 'input window, operand 1, single buffered']
    #allocation6 [shape = 's32[1]{0}', space=sflag, size = 0x4, scoped, tag = 'scoped memory for tpu_custom_call.1']
    #allocation7 [shape = 'u8[32768]{0}', space=vmem, size = 0x8000, scoped, tag = 'input window, operand 2, single buffered']
    #allocation8 [shape = 'u8[65536]{0}', space=vmem, size = 0x10000, scoped, tag = 'output window, operand 0']
    %8 = vsyncpa [#allocation3], 0
    %s9 = scalar_lea.sflag [#allocation3], 1
    %10 = vsyncpa %s9, 0
    %11 = vsyncpa [#allocation6], 0
    %12 = vsyncpa [#allocation4], 0
    %s13 = scalar_lea.sflag [#allocation4], 1
    %14 = vsyncpa %s13, 0
    loop: start=0, step=1, limit=4
    $region2: #{tpu_custom_call.1} parent=1 // loop_pre_header
      _
    $region3: #{tpu_custom_call.1} parent=1 // loop_header
      %s16 = sphi 0, %s20
      %p17 = scmp.ge.s32.totalorder %s16, 4
      %s23 = sphi 0, %s35
      %s24 = sphi 0, %s31
      %s25 = sphi 0, %s23
      %s26 = sphi 0, %s24
      %s27 = sphi 0, %s25
      %s28 = sphi 0, %s26
      %s40 = sphi 0, %s42
      %s43 = sphi 0, %s40
      %s44 = sphi 0, %s43
      %s60 = sphi 0, %s44
      %s66 = sphi 0, %s68
      %s69 = sphi 0, %s66
      %s70 = sphi 0, %s69
      %s86 = sphi 0, %s70
      %s92 = sphi 0, %s94
      %s95 = sphi 0, %s92
      %s96 = sphi 0, %s95
      %s112 = sphi 0, %s96
      %s120 = sphi 0, %s122
      %s123 = sphi 0, %s120
      %s124 = sphi 0, %s123
      %s140 = sphi 0, %s124
    $region4: #{tpu_custom_call.1} parent=1 // loop_header_branch
      %19 = sbr.rel (%p17) target = $region8
    $region5: #{tpu_custom_call.1} parent=1 // loop_body
      %s21 = ssub.s32 %s16, 1
      %s22 = ssub.s32 %s16, 2
      %s29 = sadd.s32 1, %s24
      %p30 = scmp.ge.s32.totalorder %s29, 2
      %s31 = scalar_select %p30, 0, %s29
      %s32 = sadd.s32 1, %s23
      %s33 = scalar_select %p30, %s32, %s23
      %p34 = scmp.ge.s32.totalorder %s33, 1
      %s35 = scalar_select %p34, 0, %s33
      %s36 = ssub.s32 %s24, %s31
      %s37 = ssub.s32 %s23, %s35
      %s38 = sor.u32 %s36, %s37
      %p39 = scmp.eq.s32.totalorder %s38, 0
      %s41 = sadd.s32 %s40, 1
      %s42 = scalar_select %p39, %s40, %s41
      %p45 = pneg %p39
      %p46 = scmp.eq.s32.totalorder %s16, 1
      %p47 = por %p45, %p46
      %p48 = scmp.ne.s32.totalorder %s40, %s43
      %p49 = scmp.eq.s32.totalorder %s16, 0
      %p50 = por %p48, %p49
      %p51 = scmp.ne.s32.totalorder %s40, %s43
      %p52 = scmp.eq.s32.totalorder %s21, 1
      %p53 = por %p51, %p52
      %p54 = scmp.ne.s32.totalorder %s43, %s44
      %p55 = scmp.eq.s32.totalorder %s21, 0
      %p56 = por %p54, %p55
      %p57 = scmp.ne.s32.totalorder %s43, %s44
      %p58 = scmp.eq.s32.totalorder %s22, 1
      %p59 = por %p57, %p58
      %p61 = scmp.ne.s32.totalorder %s44, %s60
      %p62 = scmp.eq.s32.totalorder %s22, 0
      %p63 = por %p61, %p62
      %s64 = ssub.s32 %s23, %s35
      %p65 = scmp.eq.s32.totalorder %s64, 0
      %s67 = sadd.s32 %s66, 1
      %s68 = scalar_select %p65, %s66, %s67
      %p71 = pneg %p65
      %p72 = scmp.eq.s32.totalorder %s16, 1
      %p73 = por %p71, %p72
      %p74 = scmp.ne.s32.totalorder %s66, %s69
      %p75 = scmp.eq.s32.totalorder %s16, 0
      %p76 = por %p74, %p75
      %p77 = scmp.ne.s32.totalorder %s66, %s69
      %p78 = scmp.eq.s32.totalorder %s21, 1
      %p79 = por %p77, %p78
      %p80 = scmp.ne.s32.totalorder %s69, %s70
      %p81 = scmp.eq.s32.totalorder %s21, 0
      %p82 = por %p80, %p81
      %p83 = scmp.ne.s32.totalorder %s69, %s70
      %p84 = scmp.eq.s32.totalorder %s22, 1
      %p85 = por %p83, %p84
      %p87 = scmp.ne.s32.totalorder %s70, %s86
      %p88 = scmp.eq.s32.totalorder %s22, 0
      %p89 = por %p87, %p88
      %s90 = ssub.s32 %s23, %s35
      %p91 = scmp.eq.s32.totalorder %s90, 0
      %s93 = sadd.s32 %s92, 1
      %s94 = scalar_select %p91, %s92, %s93
      %p97 = pneg %p91
      %p98 = scmp.eq.s32.totalorder %s16, 1
      %p99 = por %p97, %p98
      %p100 = scmp.ne.s32.totalorder %s92, %s95
      %p101 = scmp.eq.s32.totalorder %s16, 0
      %p102 = por %p100, %p101
      %p103 = scmp.ne.s32.totalorder %s92, %s95
      %p104 = scmp.eq.s32.totalorder %s21, 1
      %p105 = por %p103, %p104
      %p106 = scmp.ne.s32.totalorder %s95, %s96
      %p107 = scmp.eq.s32.totalorder %s21, 0
      %p108 = por %p106, %p107
      %p109 = scmp.ne.s32.totalorder %s95, %s96
      %p110 = scmp.eq.s32.totalorder %s22, 1
      %p111 = por %p109, %p110
      %p113 = scmp.ne.s32.totalorder %s96, %s112
      %p114 = scmp.eq.s32.totalorder %s22, 0
      %p115 = por %p113, %p114
      %s116 = ssub.s32 %s24, %s31
      %s117 = ssub.s32 %s23, %s35
      %s118 = sor.u32 %s116, %s117
      %p119 = scmp.eq.s32.totalorder %s118, 0
      %s121 = sadd.s32 %s120, 1
      %s122 = scalar_select %p119, %s120, %s121
      %p125 = pneg %p119
      %p126 = scmp.eq.s32.totalorder %s16, 1
      %p127 = por %p125, %p126
      %p128 = scmp.ne.s32.totalorder %s120, %s123
      %p129 = scmp.eq.s32.totalorder %s16, 0
      %p130 = por %p128, %p129
      %p131 = scmp.ne.s32.totalorder %s120, %s123
      %p132 = scmp.eq.s32.totalorder %s21, 1
      %p133 = por %p131, %p132
      %p134 = scmp.ne.s32.totalorder %s123, %s124
      %p135 = scmp.eq.s32.totalorder %s21, 0
      %p136 = por %p134, %p135
      %p137 = scmp.ne.s32.totalorder %s123, %s124
      %p138 = scmp.eq.s32.totalorder %s22, 1
      %p139 = por %p137, %p138
      %p141 = scmp.ne.s32.totalorder %s124, %s140
      %p142 = scmp.eq.s32.totalorder %s22, 0
      %p143 = por %p141, %p142
      %p144 = scmp.le.s32.totalorder 1, %s16
      %p145 = scmp.lt.s32.totalorder %s16, 3
      %p146 = pnand %p144, %p145
      %p147 = pneg %p146
      // Predicated region
      $region9: #{tpu_custom_call.1} parent=5 // pred_check
        _
      $region10: #{tpu_custom_call.1} parent=5 // pred_check_branch
        %149 = sbr.rel (%p146) target = $region12
      $region11: #{tpu_custom_call.1} parent=5 // pred_region
        %s150 = ssub.s32 %s16, 1
        // Predicated region
        $region13: #{tpu_custom_call.1} parent=11 // pred_check
          %p151 = pneg %p82
        $region14: #{tpu_custom_call.1} parent=11 // pred_check_branch
          %153 = sbr.rel (%p151) target = $region16
        $region15: #{tpu_custom_call.1} parent=11 // pred_region
          %s154 = smul.u32 8, %s25
          %s156 = ssub.s32 1024, 1024
          %157 = vsyncadd [#allocation6], %s156
          %s158 = smul.addr %s154, 128
          %s159 = scalar_lea.hbm %s1, %s158
          %s160 = sshll.u32 [#allocation5], 4
          %s161 = int_to_ptr.vmem [resolvable:$true] %s160
          %166 = dma.hbm_to_vmem [thread:$0]  %s159, 1024, %s161, [#allocation6], 128, 128, 8
        $region16: #{tpu_custom_call.1} parent=11 // pred_fallthru
          _
        // Predicated region
        $region17: #{tpu_custom_call.1} parent=11 // pred_check
          %p167 = pneg %p108
        $region18: #{tpu_custom_call.1} parent=11 // pred_check_branch
          %169 = sbr.rel (%p167) target = $region20
        $region19: #{tpu_custom_call.1} parent=11 // pred_region
          %s170 = smul.u32 8, %s25
          %s172 = ssub.s32 1024, 1024
          %173 = vsyncadd [#allocation6], %s172
          %s174 = smul.addr %s170, 128
          %s175 = scalar_lea.hbm %s2, %s174
          %s176 = sshll.u32 [#allocation7], 4
          %s177 = int_to_ptr.vmem [resolvable:$true] %s176
          %182 = dma.hbm_to_vmem [thread:$0]  %s175, 1024, %s177, [#allocation6], 128, 128, 8
        $region20: #{tpu_custom_call.1} parent=11 // pred_fallthru
          _
      $region12: #{tpu_custom_call.1} parent=5 // pred_fallthru
        _
      %p183 = scmp.lt.s32.totalorder %s16, 2
      // Predicated region
      $region21: #{tpu_custom_call.1} parent=5 // pred_check
        %p184 = pneg %p183
      $region22: #{tpu_custom_call.1} parent=5 // pred_check_branch
        %186 = sbr.rel (%p184) target = $region24
      $region23: #{tpu_custom_call.1} parent=5 // pred_region
        // Predicated region
        $region25: #{tpu_custom_call.1} parent=23 // pred_check
          %p187 = pneg %p50
        $region26: #{tpu_custom_call.1} parent=23 // pred_check_branch
          %189 = sbr.rel (%p187) target = $region28
        $region27: #{tpu_custom_call.1} parent=23 // pred_region
          %s190 = sand.u32 %s40, 1
          %s191 = scalar_lea.sflag [#allocation3], %s190
          %s192 = sand.u32 %s40, 1
          %s193 = smul.addr %s192, 64
          %s194 = scalar_lea.vmem [#allocation2], %s193
          %s195 = smul.u32 8, %s23
          %s197 = ssub.s32 1024, 1024
          %198 = vsyncadd %s191, %s197
          %s199 = smul.addr %s24, 8
          %s200 = sadd.s32 %s195, %s199
          %s201 = smul.addr %s200, 128
          %s202 = scalar_lea.hbm %s0, %s201
          %s203 = sshll.u32 %s194, 4
          %s204 = int_to_ptr.vmem [resolvable:$true] %s203
          %209 = dma.hbm_to_vmem [thread:$0]  %s202, 1024, %s204, %s191, 128, 128, 8
        $region28: #{tpu_custom_call.1} parent=23 // pred_fallthru
          _
      $region24: #{tpu_custom_call.1} parent=5 // pred_fallthru
        _
      %p210 = scmp.le.s32.totalorder 1, %s16
      %p211 = scmp.lt.s32.totalorder %s16, 3
      %p212 = pnand %p210, %p211
      %p213 = pneg %p212
      // Predicated region
      $region29: #{tpu_custom_call.1} parent=5 // pred_check
        _
      $region30: #{tpu_custom_call.1} parent=5 // pred_check_branch
        %215 = sbr.rel (%p212) target = $region32
      $region31: #{tpu_custom_call.1} parent=5 // pred_region
        %s216 = ssub.s32 %s16, 1
        %s217 = sand.u32 %s43, 1
        %s218 = scalar_lea.sflag [#allocation3], %s217
        %s219 = sand.u32 %s43, 1
        %s220 = smul.addr %s219, 64
        %s221 = scalar_lea.vmem [#allocation2], %s220
        // Predicated region
        $region33: #{tpu_custom_call.1} parent=31 // pred_check
          %p222 = pneg %p56
        $region34: #{tpu_custom_call.1} parent=31 // pred_check_branch
          %224 = sbr.rel (%p222) target = $region36
        $region35: #{tpu_custom_call.1} parent=31 // pred_region
          %225 = dma.done %s218, 1024
        $region36: #{tpu_custom_call.1} parent=31 // pred_fallthru
          _
        // Predicated region
        $region37: #{tpu_custom_call.1} parent=31 // pred_check
          %p226 = pneg %p82
        $region38: #{tpu_custom_call.1} parent=31 // pred_check_branch
          %228 = sbr.rel (%p226) target = $region40
        $region39: #{tpu_custom_call.1} parent=31 // pred_region
          %229 = dma.done [#allocation6], 1024
        $region40: #{tpu_custom_call.1} parent=31 // pred_fallthru
          _
        // Predicated region
        $region41: #{tpu_custom_call.1} parent=31 // pred_check
          %p230 = pneg %p108
        $region42: #{tpu_custom_call.1} parent=31 // pred_check_branch
          %232 = sbr.rel (%p230) target = $region44
        $region43: #{tpu_custom_call.1} parent=31 // pred_region
          %233 = dma.done [#allocation6], 1024
        $region44: #{tpu_custom_call.1} parent=31 // pred_fallthru
          _
        %s234 = sand.u32 %s43, 1
        %s235 = scalar_lea.sflag [#allocation3], %s234
        %s236 = sand.u32 %s43, 1
        %s237 = smul.addr %s236, 64
        %s238 = scalar_lea.vmem [#allocation2], %s237
        %p239 = pneg %p56
        %p240 = pneg %p53
        %p241 = pneg %p82
        %p242 = pneg %p79
        %p243 = pneg %p108
        %p244 = pneg %p105
        %p245 = pneg %p136
        %p246 = pneg %p133
        %s247 = sand.u32 %s123, 1
        %s248 = scalar_lea.sflag [#allocation4], %s247
        %s249 = sand.u32 %s123, 1
        %s250 = smul.addr %s249, 64
        %s251 = scalar_lea.vmem [#allocation8], %s250
        %s252 = smul.u32 8, %s25
        %s253 = smul.u32 8, %s25
        %s254 = smul.u32 8, %s25
        %s255 = smul.u32 8, %s25
        %v256 = vld [vmem:[%s221] sm:$0xff]
        %v257 = vld [vmem:[%s221 + $0x8] sm:$0xff]
        %v258 = vld [vmem:[%s221 + $0x10] sm:$0xff]
        %v259 = vld [vmem:[%s221 + $0x18] sm:$0xff]
        %v260 = vld [vmem:[%s221 + $0x20] sm:$0xff]
        %v261 = vld [vmem:[%s221 + $0x28] sm:$0xff]
        %v262 = vld [vmem:[%s221 + $0x30] sm:$0xff]
        %v263 = vld [vmem:[%s221 + $0x38] sm:$0xff]
        %v264 = vlaneseq
        %v265 = vand.u32 %v264, 127
        %v266 = vand.u32 %v265, 31
        %vm267 = vcmp.lt.s32.totalorder %v266, 16
        %276 = vrot.lane.b32.xlu0 %v256, 112
        %v277 = vpop.permute.xlu0 %276
        %278 = vrot.lane.b32.xlu0 %v257, 112
        %v279 = vpop.permute.xlu0 %278
        %280 = vrot.lane.b32.xlu0 %v258, 112
        %v281 = vpop.permute.xlu0 %280
        %282 = vrot.lane.b32.xlu0 %v259, 112
        %v283 = vpop.permute.xlu0 %282
        %284 = vrot.lane.b32.xlu0 %v260, 112
        %v285 = vpop.permute.xlu0 %284
        %286 = vrot.lane.b32.xlu0 %v261, 112
        %v287 = vpop.permute.xlu0 %286
        %288 = vrot.lane.b32.xlu0 %v262, 112
        %v289 = vpop.permute.xlu0 %288
        %290 = vrot.lane.b32.xlu0 %v263, 112
        %v291 = vpop.permute.xlu0 %290
        %300 = vrot.lane.b32.xlu0 %v256, 16
        %v301 = vpop.permute.xlu0 %300
        %302 = vrot.lane.b32.xlu0 %v257, 16
        %v303 = vpop.permute.xlu0 %302
        %304 = vrot.lane.b32.xlu0 %v258, 16
        %v305 = vpop.permute.xlu0 %304
        %306 = vrot.lane.b32.xlu0 %v259, 16
        %v307 = vpop.permute.xlu0 %306
        %308 = vrot.lane.b32.xlu0 %v260, 16
        %v309 = vpop.permute.xlu0 %308
        %310 = vrot.lane.b32.xlu0 %v261, 16
        %v311 = vpop.permute.xlu0 %310
        %312 = vrot.lane.b32.xlu0 %v262, 16
        %v313 = vpop.permute.xlu0 %312
        %314 = vrot.lane.b32.xlu0 %v263, 16
        %v315 = vpop.permute.xlu0 %314
        %v324 = vsel %vm267, %v277, %v301
        %v325 = vsel %vm267, %v279, %v303
        %v326 = vsel %vm267, %v281, %v305
        %v327 = vsel %vm267, %v283, %v307
        %v328 = vsel %vm267, %v285, %v309
        %v329 = vsel %vm267, %v287, %v311
        %v330 = vsel %vm267, %v289, %v313
        %v331 = vsel %vm267, %v291, %v315
        %v332 = vld [vmem:[#allocation5] sm:$0xff]
        %v333 = vld [vmem:[#allocation5 + $0x8] sm:$0xff]
        %v334 = vld [vmem:[#allocation5 + $0x10] sm:$0xff]
        %v335 = vld [vmem:[#allocation5 + $0x18] sm:$0xff]
        %v336 = vld [vmem:[#allocation5 + $0x20] sm:$0xff]
        %v337 = vld [vmem:[#allocation5 + $0x28] sm:$0xff]
        %v338 = vld [vmem:[#allocation5 + $0x30] sm:$0xff]
        %v339 = vld [vmem:[#allocation5 + $0x38] sm:$0xff]
        %v340 = vmul.f32 %v256, %v332
        %v341 = vmul.f32 %v257, %v333
        %v342 = vmul.f32 %v258, %v334
        %v343 = vmul.f32 %v259, %v335
        %v344 = vmul.f32 %v260, %v336
        %v345 = vmul.f32 %v261, %v337
        %v346 = vmul.f32 %v262, %v338
        %v347 = vmul.f32 %v263, %v339
        %v348 = vld [vmem:[#allocation7] sm:$0xff]
        %v349 = vld [vmem:[#allocation7 + $0x8] sm:$0xff]
        %v350 = vld [vmem:[#allocation7 + $0x10] sm:$0xff]
        %v351 = vld [vmem:[#allocation7 + $0x18] sm:$0xff]
        %v352 = vld [vmem:[#allocation7 + $0x20] sm:$0xff]
        %v353 = vld [vmem:[#allocation7 + $0x28] sm:$0xff]
        %v354 = vld [vmem:[#allocation7 + $0x30] sm:$0xff]
        %v355 = vld [vmem:[#allocation7 + $0x38] sm:$0xff]
        %v356 = vmul.f32 %v324, %v348
        %v357 = vmul.f32 %v325, %v349
        %v358 = vmul.f32 %v326, %v350
        %v359 = vmul.f32 %v327, %v351
        %v360 = vmul.f32 %v328, %v352
        %v361 = vmul.f32 %v329, %v353
        %v362 = vmul.f32 %v330, %v354
        %v363 = vmul.f32 %v331, %v355
        %v364 = vadd.f32 %v340, %v356
        %v365 = vadd.f32 %v341, %v357
        %v366 = vadd.f32 %v342, %v358
        %v367 = vadd.f32 %v343, %v359
        %v368 = vadd.f32 %v344, %v360
        %v369 = vadd.f32 %v345, %v361
        %v370 = vadd.f32 %v346, %v362
        %v371 = vadd.f32 %v347, %v363
        %372 = vst [vmem:[%s251] sm:$0xff] %v364
        %373 = vst [vmem:[%s251 + $0x8] sm:$0xff] %v365
        %374 = vst [vmem:[%s251 + $0x10] sm:$0xff] %v366
        %375 = vst [vmem:[%s251 + $0x18] sm:$0xff] %v367
        %376 = vst [vmem:[%s251 + $0x20] sm:$0xff] %v368
        %377 = vst [vmem:[%s251 + $0x28] sm:$0xff] %v369
        %378 = vst [vmem:[%s251 + $0x30] sm:$0xff] %v370
        %379 = vst [vmem:[%s251 + $0x38] sm:$0xff] %v371
        %s380 = sand.u32 %s123, 1
        %s381 = scalar_lea.sflag [#allocation4], %s380
        %s382 = sand.u32 %s123, 1
        %s383 = smul.addr %s382, 64
        %s384 = scalar_lea.vmem [#allocation8], %s383
        // Predicated region
        $region45: #{tpu_custom_call.1} parent=31 // pred_check
          %p385 = pneg %p133
        $region46: #{tpu_custom_call.1} parent=31 // pred_check_branch
          %387 = sbr.rel (%p385) target = $region48
        $region47: #{tpu_custom_call.1} parent=31 // pred_region
          %s388 = smul.u32 8, %s25
          %s390 = ssub.s32 1024, 1024
          %391 = vsyncadd %s381, %s390
          %s392 = smul.addr %s26, 8
          %s393 = sadd.s32 %s388, %s392
          %s394 = smul.addr %s393, 128
          %s395 = scalar_lea.hbm %s3, %s394
          %s396 = sshll.u32 %s384, 4
          %s397 = int_to_ptr.vmem [resolvable:$true] %s396
          %402 = dma.vmem_to_hbm [thread:$0]  %s397, 1024, %s395, %s381, 128, 128, 8
        $region48: #{tpu_custom_call.1} parent=31 // pred_fallthru
          _
      $region32: #{tpu_custom_call.1} parent=5 // pred_fallthru
        _
      %p403 = scmp.le.s32.totalorder 2, %s16
      // Predicated region
      $region49: #{tpu_custom_call.1} parent=5 // pred_check
        %p404 = pneg %p403
      $region50: #{tpu_custom_call.1} parent=5 // pred_check_branch
        %406 = sbr.rel (%p404) target = $region52
      $region51: #{tpu_custom_call.1} parent=5 // pred_region
        %s407 = ssub.s32 %s16, 2
        // Predicated region
        $region53: #{tpu_custom_call.1} parent=51 // pred_check
          %p408 = pneg %p139
        $region54: #{tpu_custom_call.1} parent=51 // pred_check_branch
          %410 = sbr.rel (%p408) target = $region56
        $region55: #{tpu_custom_call.1} parent=51 // pred_region
          %s411 = sand.u32 %s124, 1
          %s412 = scalar_lea.sflag [#allocation4], %s411
          %s413 = sand.u32 %s124, 1
          %s414 = smul.addr %s413, 64
          %s415 = scalar_lea.vmem [#allocation8], %s414
          %416 = dma.done %s412, 1024
        $region56: #{tpu_custom_call.1} parent=51 // pred_fallthru
          _
      $region52: #{tpu_custom_call.1} parent=5 // pred_fallthru
        _
    $region6: #{tpu_custom_call.1} parent=1 // loop_footer
      %s20 = sadd.s32 1, %s16
    $region7: #{tpu_custom_call.1} parent=1 // loop_footer_branch
      %15 = sbr.rel target = $region3
    $region8: #{tpu_custom_call.1} parent=1 // loop_exit
      _
    %417 = vsyncpa [#allocation3], 1
    %s418 = scalar_lea.sflag [#allocation3], 1
    %419 = vsyncpa %s418, 1
    %420 = vsyncpa [#allocation6], 1
    %421 = vsyncpa [#allocation4], 1
    %s422 = scalar_lea.sflag [#allocation4], 1
    %423 = vsyncpa %s422, 1

</llo_original>
